<compile_context>
chip_gen: v7x
topology: tpu7x:2x2x1
jax: 0.10.0
libtpu: 0.0.40
codegen_flags: <defaults>
</compile_context>

<pallas_src>
import functools
import math

import jax
import jax.numpy as jnp
from jax.experimental import pallas as pl
from jax.experimental.pallas import tpu as pltpu

_SMALL_N = 128                          # reduction axes <= this use the sublane layout
_VMEM_LIMIT_BYTES = 48 * 1024 * 1024    # safe on v5e/v6e (128 MiB) and v7x (64 MiB/TC)


# ----------------------------------------------------------------------------- kernels
def _inv_denom(n: int) -> float:
    # torch.var default is unbiased (divide by n - 1); n == 1 -> NaN, like torch.
    return (1.0 / (n - 1)) if n > 1 else float("nan")


def _var_lane_kernel(x_ref, o_ref, *, n: int):
    """Unbiased variance along the last (lane) axis of a (tile_rows, n) block."""
    x = x_ref[...].astype(jnp.float32)                      # f32 accumulation
    mean = jnp.sum(x, axis=-1, keepdims=True) * (1.0 / n)
    d = x - mean
    ssq = jnp.sum(d * d, axis=-1, keepdims=True)
    o_ref[...] = (ssq * _inv_denom(n)).astype(o_ref.dtype)


def _var_sublane_kernel(x_ref, o_ref, *, n: int):
    """Unbiased variance along the sublane axis of an (n, tile_cols) block.

    The (1, tile_cols) output block gives lane-dense stores for free.
    """
    x = x_ref[...].astype(jnp.float32)
    mean = jnp.sum(x, axis=0, keepdims=True) * (1.0 / n)
    d = x - mean
    ssq = jnp.sum(d * d, axis=0, keepdims=True)
    o_ref[...] = (ssq * _inv_denom(n)).astype(o_ref.dtype)


# ------------------------------------------------------------------------ tile sizing
def _cdiv(a: int, b: int) -> int:
    return -(-a // b)


def _round_up(a: int, b: int) -> int:
    return _cdiv(a, b) * b


def _target_block_bytes(itemsize: int) -> int:
    # v7x has only 64 MiB VMEM per TensorCore and the kernel casts to f32 internally,
    # so narrow input dtypes get a smaller block target (f32 temporaries ~2x the block).
    if itemsize >= 4:
        return 8 * 1024 * 1024
    if itemsize == 2:
        return 5 * 1024 * 1024
    return 3 * 1024 * 1024


def _pick_tile(length: int, bytes_per_item: int, target_bytes: int, quantum: int,
               min_steps: int = 2) -> int:
    """Tile size along `length` (a multiple of `quantum`, or `length` itself when tiny).

    Sized so one block holds ~target_bytes (long DMAs amortize the ~0.35us per-grid-step
    overhead), capped so the grid has >= min_steps steps whenever possible (v7x megacore
    sharding of the 'parallel' axis), preferring an exact divisor of `length` so the edge
    block is not partially out of bounds.
    """
    if length <= quantum:
        return length                                       # full-extent block (legal)
    max_tile = max(quantum, (target_bytes // max(1, bytes_per_item)) // quantum * quantum)
    cap = _round_up(_cdiv(length, min_steps), quantum)      # guarantees >= min_steps steps
    max_tile = min(max_tile, max(quantum, cap), (length // quantum) * quantum)
    lo = max(quantum, (max_tile // 2 // quantum) * quantum)
    for cand in range(max_tile, lo - 1, -quantum):
        if length % cand == 0:
            return cand
    return max_tile                     # Pallas masks the partially-OOB edge block.


def _compiler_params(num_grid_axes: int) -> pltpu.CompilerParams:
    return pltpu.CompilerParams(
        dimension_semantics=("parallel",) * num_grid_axes,
        vmem_limit_bytes=_VMEM_LIMIT_BYTES,
    )


# --------------------------------------------------------------------------- wrappers
def _var_last_dim(x: jax.Array) -> jax.Array:
    """x.var(dim=-1, keepdim=True) for any-rank x."""
    lead = x.shape[:-1]
    n = x.shape[-1]
    rows = int(math.prod(lead))
    itemsize = jnp.dtype(x.dtype).itemsize
    target = _target_block_bytes(itemsize)
    x2d = x.reshape(rows, n)            # contiguous reshape: no copy

    if n > _SMALL_N:
        # Lane-reduction layout.  VMEM cost per row includes lane padding to x128.
        row_bytes = _round_up(n, 128) * itemsize
        tile_r = _pick_tile(rows, row_bytes, target, 8)
        # TODO(synk): reduction axes so large that an (8, n) block exceeds the VMEM
        # budget would need a multi-pass (K-tiled) accumulation kernel.
        out2d = pl.pallas_call(
            functools.partial(_var_lane_kernel, n=n),
            out_shape=jax.ShapeDtypeStruct((rows, 1), x.dtype),
            grid_spec=pltpu.PrefetchScalarGridSpec(
                num_scalar_prefetch=0,
                grid=(pl.cdiv(rows, tile_r),),
                in_specs=[pl.BlockSpec((tile_r, n), lambda i: (i, 0))],
                out_specs=pl.BlockSpec((tile_r, 1), lambda i: (i, 0)),
            ),
            compiler_params=_compiler_params(1),
        )(x2d)
        return out2d.reshape(lead + (1,))

    # Small n: the (rows, n<=128) layout would pad every row to 128 lanes in VMEM
    # (128/n x waste) and scatter the DMA; transpose once so the reduction axis sits on
    # sublanes and both input tiles and output are lane-dense.
    # TODO(synk): for huge `rows` with tiny n, fusing this transpose into the kernel
    # (strided in-kernel DMA) would save one HBM pass.
    xt = x2d.T                                          # (n, rows)
    col_bytes = _round_up(n, 8) * itemsize
    tile_c = _pick_tile(rows, col_bytes, target, 128)
    out_row = pl.pallas_call(
        functools.partial(_var_sublane_kernel, n=n),
        out_shape=jax.ShapeDtypeStruct((1, rows), x.dtype),
        grid_spec=pltpu.PrefetchScalarGridSpec(
            num_scalar_prefetch=0,
            grid=(pl.cdiv(rows, tile_c),),
            in_specs=[pl.BlockSpec((n, tile_c), lambda i: (0, i))],
            out_specs=pl.BlockSpec((1, tile_c), lambda i: (0, i)),
        ),
        compiler_params=_compiler_params(1),
    )(xt)
    return out_row.reshape(lead + (1,))


def _var_second_to_last(x: jax.Array) -> jax.Array:
    """x.var(dim=-2, keepdim=True) with no transpose: reduce along sublanes in-kernel."""
    lead = x.shape[:-2]
    n, T = x.shape[-2], x.shape[-1]
    outer = int(math.prod(lead))
    itemsize = jnp.dtype(x.dtype).itemsize
    target = _target_block_bytes(itemsize)
    x3 = x.reshape(outer, n, T)         # contiguous reshape: no copy

    col_bytes = _round_up(n, 8) * itemsize
    tile_t = _pick_tile(T, col_bytes, target, 128)
    out3 = pl.pallas_call(
        functools.partial(_var_sublane_kernel, n=n),
        out_shape=jax.ShapeDtypeStruct((outer, 1, T), x.dtype),
        grid_spec=pltpu.PrefetchScalarGridSpec(
            num_scalar_prefetch=0,
            grid=(outer, pl.cdiv(T, tile_t)),
            # Leading dim is squeezed (None) so the kernel sees 2-D (n, tile_t) blocks.
            in_specs=[pl.BlockSpec((None, n, tile_t), lambda o, t: (o, 0, t))],
            out_specs=pl.BlockSpec((None, 1, tile_t), lambda o, t: (o, 0, t)),
        ),
        compiler_params=_compiler_params(2),
    )(x3)
    return out3.reshape(lead + (1, T))


def var_layer(x: jax.Array, dim: int = -1) -> jax.Array:
    """Equivalent of PyTorch VarLayer(dim).forward(x): x.var(dim, keepdim=True)."""
    ndim = x.ndim
    d = dim % ndim
    itemsize = jnp.dtype(x.dtype).itemsize

    if d == ndim - 1:
        return _var_last_dim(x)

    if d == ndim - 2:
        n, T = x.shape[-2], x.shape[-1]
        # Only if an (n, min(T,128)) block fits the VMEM block budget; otherwise fall
        # through to the general moveaxis path below.
        if _round_up(n, 8) * min(T, 128) * itemsize <= _target_block_bytes(itemsize):
            return _var_second_to_last(x)

    # General dim: move the reduction axis to the back (one HBM transpose), reduce, move back.
    # TODO(synk): a fused in-kernel strided reduction would avoid this extra HBM pass.
    xm = jnp.moveaxis(x, d, -1)
    out = _var_last_dim(xm)
    return jnp.moveaxis(out, -1, d)


# ------------------------------------------------------------------------------- main
if __name__ == "__main__":
    key = jax.random.PRNGKey(0)
    k0, k1, k2 = jax.random.split(key, 3)

    # (batch, filter-bands, EEG channels, time) — VarLayer in the EEG models reduces time.
    x = jax.random.normal(k0, (2, 4, 16, 16), dtype=jnp.float32)

    checks = [
        (x, -1),                                                        # small-n sublane path
        (jax.random.normal(k1, (2, 4, 8, 256), dtype=jnp.float32), -1), # lane-reduction path
        (x, 2),                                                         # dim == -2: no transpose
        (x, 1),                                                         # general dim: moveaxis path
        (jax.random.normal(k2, (3, 5, 200), dtype=jnp.float32), -1),    # ragged rows: masked edge block
    ]
    for xi, di in checks:
        y = jax.block_until_ready(var_layer(xi, dim=di))
        y_ref = jnp.var(xi, axis=di, keepdims=True, ddof=1)
        assert y.shape == y_ref.shape and y.dtype == xi.dtype, (y.shape, y_ref.shape, y.dtype)
        err = float(jnp.max(jnp.abs(y - y_ref)))
        assert err < 1e-4, (di, err)

    print("KERNEL_OK")
</pallas_src>

<mosaic_0001>
module attributes {stable_mosaic.version = 11 : i64} {
  func.func @_var_sublane_kernel(%arg0: i32, %arg1: memref<16x128xf32, #tpu.memory_space<vmem>>, %arg2: memref<1x128xf32, #tpu.memory_space<vmem>>) attributes {dimension_semantics = [#tpu.dimension_semantics<parallel>], iteration_bounds = array<i64: 1>, scalar_prefetch = 0 : i64, scratch_operands = 0 : i64, tpu.core_type = #tpu.core_type<tc>, window_params = [{transform_indices = @transform_0, window_bounds = array<i64: 16, 128>}, {transform_indices = @transform_1, window_bounds = array<i64: 1, 128>}]} {
    %c0 = arith.constant 0 : index
    %c0_0 = arith.constant 0 : index
    %0 = vector.load %arg1[%c0, %c0_0] : memref<16x128xf32, #tpu.memory_space<vmem>>, vector<16x128xf32>
    %cst = arith.constant dense<0.000000e+00> : vector<128xf32>
    %1 = vector.multi_reduction <add>, %0, %cst [0] : vector<16x128xf32> to vector<128xf32>
    %2 = vector.shape_cast %1 : vector<128xf32> to vector<1x128xf32>
    %cst_1 = arith.constant 6.250000e-02 : f32
    %3 = vector.broadcast %cst_1 : f32 to vector<1x128xf32>
    %4 = arith.mulf %2, %3 : vector<1x128xf32>
    %5 = vector.broadcast %4 : vector<1x128xf32> to vector<16x128xf32>
    %6 = arith.subf %0, %5 : vector<16x128xf32>
    %7 = arith.mulf %6, %6 : vector<16x128xf32>
    %cst_2 = arith.constant dense<0.000000e+00> : vector<128xf32>
    %8 = vector.multi_reduction <add>, %7, %cst_2 [0] : vector<16x128xf32> to vector<128xf32>
    %9 = vector.shape_cast %8 : vector<128xf32> to vector<1x128xf32>
    %cst_3 = arith.constant 0.0666666701 : f32
    %10 = vector.broadcast %cst_3 : f32 to vector<1x128xf32>
    %11 = arith.mulf %9, %10 : vector<1x128xf32>
    %c0_4 = arith.constant 0 : index
    %c0_5 = arith.constant 0 : index
    %12 = vector.load %arg2[%c0_4, %c0_5] : memref<1x128xf32, #tpu.memory_space<vmem>>, vector<1x128xf32>
    tpu.vector_store %arg2[%c0_4, %c0_5], %11 {strides = array<i32>} : memref<1x128xf32, #tpu.memory_space<vmem>>, vector<1x128xf32>,
    return
  }
  func.func @transform_0(%arg0: i32) -> (i32, i32) {
    %c0_i32 = arith.constant 0 : i32
    %c0_i32_0 = arith.constant 0 : i32
    return %c0_i32, %arg0 : i32, i32
  }
  func.func @transform_1(%arg0: i32) -> (i32, i32) {
    %c0_i32 = arith.constant 0 : i32
    %c0_i32_0 = arith.constant 0 : i32
    return %c0_i32, %arg0 : i32, i32
  }
}

</mosaic_0001>

<llo_original>
// kernel: tpu_custom_call.1
$region0: #{tpu_custom_call.1}
  #allocation0 [shape = 'u32[]', space=smem, size = 0x4, offset = 0x4, fixed_abs, tag = 'smem constant byte address 0x4 - core index']
  #allocation1 [shape = 'u32[144,128]{1,0:T(1,128)}', space=vmem, size = 0x12000, scoped, tag = 'internal scratch']
  %s0 = inlined_call_operand.hbm [shape: f32[16,128], index: 0, kind: input, shape index: {}]
  %s1 = inlined_call_operand.hbm [shape: f32[1,128], index: 1, kind: output, shape index: {}]
  %s2 = sld [smem:[#allocation0]]
  $region18: #{tpu_custom_call.1} parent=0
    _
  %s4 = ssub.s32 1, %s2
  %s5 = scalar_select 0, %s4, %s2
  $region1: #{tpu_custom_call.1} parent=0
    #allocation2 [shape = 'u8[8192]{0}', space=vmem, size = 0x2000, scoped, tag = 'input window, operand 0, single buffered']
    #allocation3 [shape = 's32[1]{0}', space=sflag, size = 0x4, scoped, tag = 'scoped memory for tpu_custom_call.1']
    #allocation4 [shape = 's32[1]{0}', space=sflag, size = 0x4, scoped, tag = 'scoped memory for tpu_custom_call.1']
    #allocation5 [shape = 'u8[512]{0}', space=vmem, size = 0x400, scoped, tag = 'output window, operand 0, single buffered']
    %6 = vsyncpa [#allocation3], 0
    %7 = vsyncpa [#allocation4], 0
    // Predicated region
    $region2: #{tpu_custom_call.1} parent=1 // pred_check
      _
    $region3: #{tpu_custom_call.1} parent=1 // pred_check_branch
      %9 = sbr.rel (0) target = $region5
    $region4: #{tpu_custom_call.1} parent=1 // pred_region
      %s11 = ssub.s32 256, 256
      %12 = vsyncadd [#allocation3], %s11
      %s13 = sshll.u32 [#allocation2], 4
      %s14 = int_to_ptr.vmem [resolvable:$true] %s13
      %19 = dma.hbm_to_vmem [thread:$0]  %s0, 256, %s14, [#allocation3], 128, 128, 8
    $region5: #{tpu_custom_call.1} parent=1 // pred_fallthru
      _
    // Predicated region
    $region6: #{tpu_custom_call.1} parent=1 // pred_check
      _
    $region7: #{tpu_custom_call.1} parent=1 // pred_check_branch
      %21 = sbr.rel (0) target = $region9
    $region8: #{tpu_custom_call.1} parent=1 // pred_region
      %22 = dma.done [#allocation3], 256
    $region9: #{tpu_custom_call.1} parent=1 // pred_fallthru
      _
    %v23 = vld [vmem:[#allocation2] sm:$0xff]
    %v24 = vld [vmem:[#allocation2 + $0x8] sm:$0xff]
    %v25 = vadd.f32 %v23, %v24
    %v26 = vrot.slane %v25, 4
    %v27 = vadd.f32 %v25, %v26
    %v28 = vrot.slane %v27, 2
    %v29 = vadd.f32 %v27, %v28
    %v30 = vrot.slane %v29, 1
    %v31 = vadd.f32 %v29, %v30
    %v32 = vmul.f32 %v31, 0.0625
    %v33 = vsub.f32 %v23, %v32
    %v34 = vsub.f32 %v24, %v32
    %v35 = vmul.f32 %v33, %v33
    %v36 = vmul.f32 %v34, %v34
    %v37 = vadd.f32 %v35, %v36
    %v38 = vrot.slane %v37, 4
    %v39 = vadd.f32 %v37, %v38
    %v40 = vrot.slane %v39, 2
    %v41 = vadd.f32 %v39, %v40
    %v42 = vrot.slane %v41, 1
    %v43 = vadd.f32 %v41, %v42
    %v44 = vmul.f32 %v43, 0.06666667
    %45 = vst [vmem:[#allocation5] sm:$0x1] %v44
    // Predicated region
    $region10: #{tpu_custom_call.1} parent=1 // pred_check
      _
    $region11: #{tpu_custom_call.1} parent=1 // pred_check_branch
      %47 = sbr.rel (0) target = $region13
    $region12: #{tpu_custom_call.1} parent=1 // pred_region
      %s49 = ssub.s32 16, 16
      %50 = vsyncadd [#allocation4], %s49
      %s52 = sshll.u32 [#allocation5], 4
      %s53 = int_to_ptr.vmem [resolvable:$true] %s52
      %55 = dma.vmem_to_hbm [thread:$0]  %s53, 16, %s1, [#allocation4]
    $region13: #{tpu_custom_call.1} parent=1 // pred_fallthru
      _
    // Predicated region
    $region14: #{tpu_custom_call.1} parent=1 // pred_check
      _
    $region15: #{tpu_custom_call.1} parent=1 // pred_check_branch
      %57 = sbr.rel (0) target = $region17
    $region16: #{tpu_custom_call.1} parent=1 // pred_region
      %58 = dma.done [#allocation4], 16
    $region17: #{tpu_custom_call.1} parent=1 // pred_fallthru
      _
    %59 = vsyncpa [#allocation3], 1
    %60 = vsyncpa [#allocation4], 1

</llo_original>
